<compile_context>
chip_gen: v7x
topology: tpu7x:2x2x1
jax: 0.10.0
libtpu: 0.0.40
codegen_flags: <defaults>
</compile_context>

<pallas_src>
import functools

import jax
import jax.numpy as jnp
from jax.experimental import pallas as pl
from jax.experimental.pallas import tpu as pltpu


def _round_up(x, m):
    return (x + m - 1) // m * m


def _pick_batch_tile(b, c):
    """Lane-axis (batch) tile size: multiple of 128, ~2 MiB of f32 per buffer."""
    c_sub = max(8, _round_up(c, 8))                  # sublane-padded class count
    budget_lanes = (2 * 1024 * 1024 // 4) // c_sub   # ~2 MiB f32 per logits tile
    tb = max(128, (budget_lanes // 128) * 128)
    tb = min(tb, _round_up(b, 128))
    # Keep the padded tail below ~1/8 of the real batch.
    while tb > 128 and (_round_up(b, tb) - b) * 8 > b:
        tb = max(128, (tb // 2) // 128 * 128)
    return tb


def _focal_loss_kernel(logits_ref, targets_ref, out_ref, *, gamma, alpha):
    # logits_ref : (C, TB)  classes on sublanes, batch on lanes
    # targets_ref: (1, TB)  int32
    # out_ref    : (1, TB)  f32 per-example focal loss
    logits = logits_ref[...].astype(jnp.float32)
    targets = targets_ref[...]

    # Numerically stable logsumexp over the class (sublane) axis.
    m = jnp.max(logits, axis=0, keepdims=True)                       # (1, TB)
    shifted = logits - m                                             # (C, TB)
    lse = jnp.log(jnp.sum(jnp.exp(shifted), axis=0, keepdims=True))  # (1, TB)

    # Gather shifted[target] via a one-hot compare (no per-row dynamic gather,
    # no (C, TB) log_probs materialization).
    cls_idx = jax.lax.broadcasted_iota(jnp.int32, logits.shape, 0)   # (C, TB)
    onehot = (cls_idx == targets).astype(jnp.float32)                # (C, TB)
    tgt_shifted = jnp.sum(onehot * shifted, axis=0, keepdims=True)   # (1, TB)

    ce = lse - tgt_shifted                  # == -log_softmax(logits)[target]
    pt = jnp.exp(-ce)
    base = jnp.maximum(1.0 - pt, 0.0)       # clamp: guards pow/log of negatives

    g = float(gamma)
    if g == int(g) and 0 <= int(g) <= 8:    # integer gamma: VPU multiplies only
        w = jnp.ones_like(base)
        for _ in range(int(g)):
            w = w * base
    else:                                   # non-integer gamma: one EUP pow
        w = jnp.power(base, jnp.float32(g))

    out_ref[...] = (alpha * w * ce).astype(out_ref.dtype)


def focal_loss(logits, targets, *, gamma=2.0, alpha=0.25, reduction="mean"):
    """Pallas focal loss. logits: (B, C) float (f32 or bf16); targets: (B,) int."""
    b, c = logits.shape
    tb = _pick_batch_tile(b, c)
    b_pad = _round_up(b, tb)

    logits_t = jnp.transpose(logits)                    # (C, B), batch on lanes
    targets_2d = targets.astype(jnp.int32).reshape(1, b)
    if b_pad != b:
        logits_t = jnp.pad(logits_t, ((0, 0), (0, b_pad - b)))
        targets_2d = jnp.pad(targets_2d, ((0, 0), (0, b_pad - b)))

    kernel = functools.partial(
        _focal_loss_kernel, gamma=float(gamma), alpha=float(alpha)
    )

    per_example = pl.pallas_call(
        kernel,
        out_shape=jax.ShapeDtypeStruct((1, b_pad), jnp.float32),
        grid=(b_pad // tb,),
        in_specs=[
            pl.BlockSpec((c, tb), lambda i: (0, i)),
            pl.BlockSpec((1, tb), lambda i: (0, i)),
        ],
        out_specs=pl.BlockSpec((1, tb), lambda i: (0, i)),
        compiler_params=pltpu.CompilerParams(
            dimension_semantics=("parallel",),
        ),
    )(logits_t, targets_2d)

    per_example = per_example[0, :b]                    # drop batch padding
    if reduction == "mean":
        return jnp.mean(per_example)
    elif reduction == "sum":
        return jnp.sum(per_example)
    else:  # 'none'
        return per_example


def _reference_focal_loss(logits, targets, gamma=2.0, alpha=0.25, reduction="mean"):
    # Pure-JAX reference matching torch.nn.functional.cross_entropy semantics.
    logp = jax.nn.log_softmax(logits.astype(jnp.float32), axis=-1)
    ce = -jnp.take_along_axis(logp, targets[:, None].astype(jnp.int32), axis=-1)[:, 0]
    pt = jnp.exp(-ce)
    fl = alpha * (1.0 - pt) ** gamma * ce
    if reduction == "mean":
        return jnp.mean(fl)
    if reduction == "sum":
        return jnp.sum(fl)
    return fl


if __name__ == "__main__":
    key = jax.random.PRNGKey(0)
    k1, k2, k3, k4 = jax.random.split(key, 4)

    # Case 1: small demo shape (batch=8, 32 classes), f32, mean reduction.
    B, C = 8, 32
    logits = jax.random.normal(k1, (B, C), dtype=jnp.float32)
    targets = jax.random.randint(k2, (B,), 0, C, dtype=jnp.int32)
    loss = jax.block_until_ready(focal_loss(logits, targets, gamma=2.0, alpha=0.25))
    ref = _reference_focal_loss(logits, targets)
    assert jnp.allclose(loss, ref, atol=1e-5, rtol=1e-5), (loss, ref)

    # Case 2: SemViQA-like 3-class head, odd batch (exercises padding), 'sum'.
    B2, C2 = 37, 3
    logits2 = jax.random.normal(k3, (B2, C2), dtype=jnp.float32)
    targets2 = jax.random.randint(k4, (B2,), 0, C2, dtype=jnp.int32)
    loss2 = jax.block_until_ready(
        focal_loss(logits2, targets2, gamma=2.0, alpha=0.25, reduction="sum")
    )
    ref2 = _reference_focal_loss(logits2, targets2, reduction="sum")
    assert jnp.allclose(loss2, ref2, atol=1e-5, rtol=1e-5), (loss2, ref2)

    # Case 3: bf16 logits stay bf16 in HBM; the kernel casts to f32 internally.
    logits3 = logits.astype(jnp.bfloat16)
    loss3 = jax.block_until_ready(focal_loss(logits3, targets))
    ref3 = _reference_focal_loss(logits3, targets)
    assert jnp.allclose(loss3, ref3, atol=1e-4, rtol=1e-4), (loss3, ref3)

    print("KERNEL_OK")
</pallas_src>

<mosaic_0001>
module attributes {stable_mosaic.version = 11 : i64} {
  func.func @_focal_loss_kernel(%arg0: i32, %arg1: memref<32x128xf32, #tpu.memory_space<vmem>>, %arg2: memref<1x128xi32, #tpu.memory_space<vmem>>, %arg3: memref<1x128xf32, #tpu.memory_space<vmem>>) attributes {dimension_semantics = [#tpu.dimension_semantics<parallel>], iteration_bounds = array<i64: 1>, scalar_prefetch = 0 : i64, scratch_operands = 0 : i64, tpu.core_type = #tpu.core_type<tc>, window_params = [{transform_indices = @transform_0, window_bounds = array<i64: 32, 128>}, {transform_indices = @transform_1, window_bounds = array<i64: 1, 128>}, {transform_indices = @transform_2, window_bounds = array<i64: 1, 128>}]} {
    %c0 = arith.constant 0 : index
    %c0_0 = arith.constant 0 : index
    %0 = vector.load %arg1[%c0, %c0_0] : memref<32x128xf32, #tpu.memory_space<vmem>>, vector<32x128xf32>
    %c0_1 = arith.constant 0 : index
    %c0_2 = arith.constant 0 : index
    %1 = vector.load %arg2[%c0_1, %c0_2] : memref<1x128xi32, #tpu.memory_space<vmem>>, vector<1x128xi32>
    %cst = arith.constant dense<0xFF800000> : vector<128xf32>
    %2 = vector.multi_reduction <maximumf>, %0, %cst [0] : vector<32x128xf32> to vector<128xf32>
    %3 = vector.shape_cast %2 : vector<128xf32> to vector<1x128xf32>
    %4 = vector.broadcast %3 : vector<1x128xf32> to vector<32x128xf32>
    %5 = arith.subf %0, %4 : vector<32x128xf32>
    %6 = math.exp %5 : vector<32x128xf32>
    %cst_3 = arith.constant dense<0.000000e+00> : vector<128xf32>
    %7 = vector.multi_reduction <add>, %6, %cst_3 [0] : vector<32x128xf32> to vector<128xf32>
    %8 = vector.shape_cast %7 : vector<128xf32> to vector<1x128xf32>
    %9 = math.log %8 : vector<1x128xf32>
    %10 = tpu.iota {dimensions = array<i32: 0>} : vector<32x128xi32>
    %11 = vector.broadcast %1 : vector<1x128xi32> to vector<32x128xi32>
    %12 = arith.cmpi eq, %10, %11 : vector<32x128xi32>
    %13 = arith.extui %12 : vector<32x128xi1> to vector<32x128xi32>
    %14 = arith.sitofp %13 : vector<32x128xi32> to vector<32x128xf32>
    %15 = arith.mulf %14, %5 : vector<32x128xf32>
    %cst_4 = arith.constant dense<0.000000e+00> : vector<128xf32>
    %16 = vector.multi_reduction <add>, %15, %cst_4 [0] : vector<32x128xf32> to vector<128xf32>
    %17 = vector.shape_cast %16 : vector<128xf32> to vector<1x128xf32>
    %18 = arith.subf %9, %17 : vector<1x128xf32>
    %cst_5 = arith.constant 0.000000e+00 : f32
    %19 = vector.broadcast %cst_5 : f32 to vector<1x128xf32>
    %20 = arith.subf %19, %18 : vector<1x128xf32>
    %21 = math.exp %20 : vector<1x128xf32>
    %cst_6 = arith.constant 1.000000e+00 : f32
    %22 = vector.broadcast %cst_6 : f32 to vector<1x128xf32>
    %23 = arith.subf %22, %21 : vector<1x128xf32>
    %cst_7 = arith.constant 0.000000e+00 : f32
    %24 = vector.broadcast %cst_7 : f32 to vector<1x128xf32>
    %25 = arith.maximumf %23, %24 : vector<1x128xf32>
    %cst_8 = arith.constant 1.000000e+00 : f32
    %26 = vector.broadcast %cst_8 : f32 to vector<1x128xf32>
    %27 = arith.mulf %26, %25 : vector<1x128xf32>
    %28 = arith.mulf %27, %25 : vector<1x128xf32>
    %cst_9 = arith.constant 2.500000e-01 : f32
    %29 = vector.broadcast %cst_9 : f32 to vector<1x128xf32>
    %30 = arith.mulf %29, %28 : vector<1x128xf32>
    %31 = arith.mulf %30, %18 : vector<1x128xf32>
    %c0_10 = arith.constant 0 : index
    %c0_11 = arith.constant 0 : index
    %32 = vector.load %arg3[%c0_10, %c0_11] : memref<1x128xf32, #tpu.memory_space<vmem>>, vector<1x128xf32>
    tpu.vector_store %arg3[%c0_10, %c0_11], %31 {strides = array<i32>} : memref<1x128xf32, #tpu.memory_space<vmem>>, vector<1x128xf32>,
    return
  }
  func.func @transform_0(%arg0: i32) -> (i32, i32) {
    %c0_i32 = arith.constant 0 : i32
    %c0_i32_0 = arith.constant 0 : i32
    return %c0_i32, %arg0 : i32, i32
  }
  func.func @transform_1(%arg0: i32) -> (i32, i32) {
    %c0_i32 = arith.constant 0 : i32
    %c0_i32_0 = arith.constant 0 : i32
    return %c0_i32, %arg0 : i32, i32
  }
  func.func @transform_2(%arg0: i32) -> (i32, i32) {
    %c0_i32 = arith.constant 0 : i32
    %c0_i32_0 = arith.constant 0 : i32
    return %c0_i32, %arg0 : i32, i32
  }
}

</mosaic_0001>

<llo_original>
// kernel: tpu_custom_call.1
$region0: #{tpu_custom_call.1}
  #allocation0 [shape = 'u32[]', space=smem, size = 0x4, offset = 0x4, fixed_abs, tag = 'smem constant byte address 0x4 - core index']
  #allocation1 [shape = 'u32[144,128]{1,0:T(1,128)}', space=vmem, size = 0x12000, scoped, tag = 'internal scratch']
  %s0 = inlined_call_operand.hbm [shape: f32[32,128], index: 0, kind: input, shape index: {}]
  %s1 = inlined_call_operand.vmem [shape: s32[1,128], index: 1, kind: input, shape index: {}]
  %s2 = inlined_call_operand.hbm [shape: f32[1,128], index: 2, kind: output, shape index: {}]
  %s3 = sld [smem:[#allocation0]]
  $region22: #{tpu_custom_call.1} parent=0
    _
  %s5 = ssub.s32 1, %s3
  %s6 = scalar_select 0, %s5, %s3
  $region1: #{tpu_custom_call.1} parent=0
    #allocation2 [shape = 'u8[16384]{0}', space=vmem, size = 0x4000, scoped, tag = 'input window, operand 0, single buffered']
    #allocation3 [shape = 's32[1]{0}', space=sflag, size = 0x4, scoped, tag = 'scoped memory for tpu_custom_call.1']
    #allocation4 [shape = 's32[1]{0}', space=sflag, size = 0x4, scoped, tag = 'scoped memory for tpu_custom_call.1']
    #allocation5 [shape = 'u8[512]{0}', space=vmem, size = 0x400, scoped, tag = 'output window, operand 0, single buffered']
    %7 = vsyncpa [#allocation3], 0
    %8 = vsyncpa [#allocation4], 0
    // Predicated region
    $region2: #{tpu_custom_call.1} parent=1 // pred_check
      _
    $region3: #{tpu_custom_call.1} parent=1 // pred_check_branch
      %10 = sbr.rel (0) target = $region5
    $region4: #{tpu_custom_call.1} parent=1 // pred_region
      %s12 = ssub.s32 512, 512
      %13 = vsyncadd [#allocation3], %s12
      %s14 = sshll.u32 [#allocation2], 4
      %s15 = int_to_ptr.vmem [resolvable:$true] %s14
      %20 = dma.hbm_to_vmem [thread:$0]  %s0, 512, %s15, [#allocation3], 128, 128, 8
    $region5: #{tpu_custom_call.1} parent=1 // pred_fallthru
      _
    // Predicated region
    $region6: #{tpu_custom_call.1} parent=1 // pred_check
      _
    $region7: #{tpu_custom_call.1} parent=1 // pred_check_branch
      %22 = sbr.rel (0) target = $region9
    $region8: #{tpu_custom_call.1} parent=1 // pred_region
      _
    $region9: #{tpu_custom_call.1} parent=1 // pred_fallthru
      _
    // Predicated region
    $region10: #{tpu_custom_call.1} parent=1 // pred_check
      _
    $region11: #{tpu_custom_call.1} parent=1 // pred_check_branch
      %24 = sbr.rel (0) target = $region13
    $region12: #{tpu_custom_call.1} parent=1 // pred_region
      %25 = dma.done [#allocation3], 512
    $region13: #{tpu_custom_call.1} parent=1 // pred_fallthru
      _
    %v26 = vld [vmem:[#allocation2] sm:$0xff]
    %v27 = vld [vmem:[#allocation2 + $0x8] sm:$0xff]
    %v28 = vld [vmem:[#allocation2 + $0x10] sm:$0xff]
    %v29 = vld [vmem:[#allocation2 + $0x18] sm:$0xff]
    %v30 = vld [vmem:[%s1] sm:$0x1]
    %v31 = vmax.f32 %v26, %v27
    %v32 = vmax.f32 %v28, %v29
    %v33 = vmax.f32 %v31, %v32
    %v34 = vrot.slane %v33, 4
    %v35 = vmax.f32 %v33, %v34
    %v36 = vrot.slane %v35, 2
    %v37 = vmax.f32 %v35, %v36
    %v38 = vrot.slane %v37, 1
    %v39 = vmax.f32 %v37, %v38
    %v40 = vsub.f32 %v26, %v39
    %v41 = vsub.f32 %v27, %v39
    %v42 = vsub.f32 %v28, %v39
    %v43 = vsub.f32 %v29, %v39
    %v44 = vmul.f32 %v40, 1.442695
    %v45 = vpow.pop %v44
    %v46 = vmul.f32 %v41, 1.442695
    %v47 = vpow.pop %v46
    %v48 = vmul.f32 %v42, 1.442695
    %v49 = vpow.pop %v48
    %v50 = vmul.f32 %v43, 1.442695
    %v51 = vpow.pop %v50
    %v52 = vadd.f32 %v45, %v47
    %v53 = vadd.f32 %v52, %v49
    %v54 = vadd.f32 %v53, %v51
    %v55 = vrot.slane %v54, 4
    %v56 = vadd.f32 %v54, %v55
    %v57 = vrot.slane %v56, 2
    %v58 = vadd.f32 %v56, %v57
    %v59 = vrot.slane %v58, 1
    %v60 = vadd.f32 %v58, %v59
    %v61 = vlog2.pop %v60
    %v62 = vmul.f32 %v61, 0.6931472
    %v63 = vlaneseq
    %v64 = vshrl.u32 %v63, 7
    %v65 = vadd.s32 %v64, 8
    %v66 = vadd.s32 %v64, 16
    %v67 = vadd.s32 %v64, 24
    %v68 = vlaneseq
    %v69 = vshrl.u32 %v68, 7
    %v70 = vsub.s32 0, %v69
    %v71 = vrot.slane %v30, %v70
    %vm72 = vcmp.eq.s32.totalorder %v64, %v71
    %vm73 = vcmp.eq.s32.totalorder %v65, %v71
    %vm74 = vcmp.eq.s32.totalorder %v66, %v71
    %vm75 = vcmp.eq.s32.totalorder %v67, %v71
    %v76 = vsel %vm72, 1, 0
    %v77 = vsel %vm73, 1, 0
    %v78 = vsel %vm74, 1, 0
    %v79 = vsel %vm75, 1, 0
    %v80 = vcvt.s32.f32 %v76
    %v81 = vcvt.s32.f32 %v77
    %v82 = vcvt.s32.f32 %v78
    %v83 = vcvt.s32.f32 %v79
    %v84 = vmul.f32 %v80, %v40
    %v85 = vmul.f32 %v81, %v41
    %v86 = vmul.f32 %v82, %v42
    %v87 = vmul.f32 %v83, %v43
    %v88 = vadd.f32 %v84, %v85
    %v89 = vadd.f32 %v88, %v86
    %v90 = vadd.f32 %v89, %v87
    %v91 = vrot.slane %v90, 4
    %v92 = vadd.f32 %v90, %v91
    %v93 = vrot.slane %v92, 2
    %v94 = vadd.f32 %v92, %v93
    %v95 = vrot.slane %v94, 1
    %v96 = vadd.f32 %v94, %v95
    %v97 = vsub.f32 %v62, %v96
    %v98 = vsub.f32 0.0, %v97
    %v99 = vmul.f32 %v98, 1.442695
    %v100 = vpow.pop %v99
    %v101 = vsub.f32 1.0, %v100
    %v102 = vmax.f32 %v101, 0.0
    %v103 = vmul.f32 %v102, %v102
    %v104 = vmul.f32 %v103, 0.25
    %v105 = vmul.f32 %v104, %v97
    %106 = vst [vmem:[#allocation5] sm:$0x1] %v105
    // Predicated region
    $region14: #{tpu_custom_call.1} parent=1 // pred_check
      _
    $region15: #{tpu_custom_call.1} parent=1 // pred_check_branch
      %108 = sbr.rel (0) target = $region17
    $region16: #{tpu_custom_call.1} parent=1 // pred_region
      %s110 = ssub.s32 16, 16
      %111 = vsyncadd [#allocation4], %s110
      %s113 = sshll.u32 [#allocation5], 4
      %s114 = int_to_ptr.vmem [resolvable:$true] %s113
      %116 = dma.vmem_to_hbm [thread:$0]  %s114, 16, %s2, [#allocation4]
    $region17: #{tpu_custom_call.1} parent=1 // pred_fallthru
      _
    // Predicated region
    $region18: #{tpu_custom_call.1} parent=1 // pred_check
      _
    $region19: #{tpu_custom_call.1} parent=1 // pred_check_branch
      %118 = sbr.rel (0) target = $region21
    $region20: #{tpu_custom_call.1} parent=1 // pred_region
      %119 = dma.done [#allocation4], 16
    $region21: #{tpu_custom_call.1} parent=1 // pred_fallthru
      _
    %120 = vsyncpa [#allocation3], 1
    %121 = vsyncpa [#allocation4], 1

</llo_original>
